<compile_context>
chip_gen: v5e
topology: v5e:2x2
jax: 0.10.0
libtpu: 0.0.40
codegen_flags: <defaults>
</compile_context>

<pallas_src>
import math

import jax
import jax.numpy as jnp
from jax.experimental import pallas as pl
from jax.experimental.pallas import tpu as pltpu

EPSILON = 0.001


def _round_up(x, m):
    return ((x + m - 1) // m) * m


def _make_kernel(bf16_transcendentals: bool):
    cdt = jnp.bfloat16 if bf16_transcendentals else jnp.float32

    def kernel(params_ref, counts_ref, g_ref, out_ref):
        # params_ref: SMEM (7,) = [w00, w01, w10, w11, b0, b1, valid_flag]
        # counts_ref: VMEM (4, TILE_B) rows = tumor_alt, tumor_ref, normal_alt, normal_ref
        # g_ref:      VMEM (2, S, TILE_B) standard-normal draws (components 0/1)
        # out_ref:    VMEM (1, TILE_B)
        valid = params_ref[6] > 0.5

        @pl.when(valid)
        def _compute():
            w00 = params_ref[0]
            w01 = params_ref[1]
            w10 = params_ref[2]
            w11 = params_ref[3]
            b0 = params_ref[4]
            b1 = params_ref[5]

            g0 = g_ref[0]          # (S, TILE_B)
            g1 = g_ref[1]          # (S, TILE_B)

            # nn.Linear(2, 2): y = x @ W.T + b
            c0 = g0 * w00 + g1 * w01 + b0
            c1 = g0 * w10 + g1 * w11 + b1

            scale = 1.0 - 2.0 * EPSILON
            tf = EPSILON + scale * jax.nn.sigmoid(c0.astype(cdt)).astype(jnp.float32)
            nf = EPSILON + scale * jax.nn.sigmoid(c1.astype(cdt)).astype(jnp.float32)

            counts = counts_ref[...]             # (4, TILE_B)
            ta = counts[0:1, :]
            tr = counts[1:2, :]
            na = counts[2:3, :]
            nr = counts[3:4, :]

            log_likelihoods_2d = (
                ta * jnp.log(tf.astype(cdt)).astype(jnp.float32)
                + tr * jnp.log((1.0 - tf).astype(cdt)).astype(jnp.float32)
                + na * jnp.log(nf.astype(cdt)).astype(jnp.float32)
                + nr * jnp.log((1.0 - nf).astype(cdt)).astype(jnp.float32)
            )                                    # (S, TILE_B)

            # logsumexp over the sample (sublane) axis, minus log(num_samples).
            m = jnp.max(log_likelihoods_2d, axis=0, keepdims=True)      # (1, TILE_B)
            lse = m + jnp.log(
                jnp.sum(jnp.exp(log_likelihoods_2d - m), axis=0, keepdims=True))
            num_samples = g_ref.shape[1]
            ll_1d = lse - math.log(num_samples)

            # per-row mask: rows with normal_alt < 1 get exactly -9999
            out_ref[...] = jnp.where(na < 1.0, jnp.float32(-9999.0), ll_1d)

        @pl.when(jnp.logical_not(valid))
        def _degenerate():
            out_ref[...] = jnp.full(out_ref.shape, -9999.0, dtype=out_ref.dtype)

    return kernel


def normal_artifact_spectrum_forward(w, b, tumor_alt_1d, tumor_ref_1d,
                                     normal_alt_1d, normal_ref_1d,
                                     gaussian_2sb, *, tile_b=512,
                                     bf16_transcendentals=False):
    """Pallas implementation of NormalArtifactSpectrum.forward.

    w: (2, 2) linear weight, b: (2,) bias.
    tumor_alt_1d / tumor_ref_1d / normal_alt_1d / normal_ref_1d: (batch,)
    gaussian_2sb: (2, num_samples, batch) i.i.d. standard-normal draws
        (stand-in for torch.randn(batch, num_samples, 2) inside the module;
        generating them directly in this layout avoids host-side strided
        slicing of the only large input).
    bf16_transcendentals: run the sigmoid/log chain in bf16 (v6e/v7x EUP 2x);
        keep False to match an f32 reference tightly (and on v5e).
    """
    f32 = jnp.float32
    batch = tumor_alt_1d.shape[0]
    num_samples = gaussian_2sb.shape[1]
    assert gaussian_2sb.shape == (2, num_samples, batch)

    # Tile the batch (lane) axis; pad batch to a 128-aligned multiple of the tile.
    tile_b = max(128, _round_up(int(tile_b), 128))
    batch_p = _round_up(batch, 128)
    tile_b = min(tile_b, batch_p)
    batch_p = _round_up(batch_p, tile_b)

    counts = jnp.stack([tumor_alt_1d, tumor_ref_1d, normal_alt_1d,
                        normal_ref_1d], axis=0).astype(f32)        # (4, batch)
    g = gaussian_2sb.astype(f32)                                   # (2, S, batch)
    if batch_p != batch:
        pad = batch_p - batch
        counts = jnp.pad(counts, ((0, 0), (0, pad)))
        g = jnp.pad(g, ((0, 0), (0, 0), (0, pad)))

    # Early-return branch of the torch module, expressed as an in-kernel flag.
    valid = (jnp.sum(counts[2]) >= 1.0).astype(f32)
    params = jnp.concatenate([w.astype(f32).reshape(-1),
                              b.astype(f32).reshape(-1),
                              valid.reshape(1)])                   # (7,)

    grid = (batch_p // tile_b,)
    kernel = _make_kernel(bf16_transcendentals)

    out = pl.pallas_call(
        kernel,
        out_shape=jax.ShapeDtypeStruct((1, batch_p), f32),
        grid_spec=pltpu.PrefetchScalarGridSpec(
            num_scalar_prefetch=0,
            grid=grid,
            in_specs=[
                pl.BlockSpec(memory_space=pltpu.MemorySpace.SMEM),      # params
                pl.BlockSpec((4, tile_b), lambda i: (0, i)),            # counts
                pl.BlockSpec((2, num_samples, tile_b), lambda i: (0, 0, i)),  # gaussians
            ],
            out_specs=pl.BlockSpec((1, tile_b), lambda i: (0, i)),
        ),
        compiler_params=pltpu.CompilerParams(
            dimension_semantics=("parallel",)),
    )(params, counts, g)

    return out[0, :batch]


def _reference_forward(w, b, ta, tr, na, nr, gaussian_2sb):
    """Pure-JAX reference mirroring the PyTorch forward (same gaussian draws)."""
    g0 = gaussian_2sb[0]              # (S, batch)
    g1 = gaussian_2sb[1]
    c0 = w[0, 0] * g0 + w[0, 1] * g1 + b[0]
    c1 = w[1, 0] * g0 + w[1, 1] * g1 + b[1]
    scale = 1.0 - 2.0 * EPSILON
    tf = EPSILON + scale * jax.nn.sigmoid(c0)
    nf = EPSILON + scale * jax.nn.sigmoid(c1)
    ll2 = (ta[None, :] * jnp.log(tf) + tr[None, :] * jnp.log(1.0 - tf)
           + na[None, :] * jnp.log(nf) + nr[None, :] * jnp.log(1.0 - nf))
    ll1 = jax.scipy.special.logsumexp(ll2, axis=0) - math.log(gaussian_2sb.shape[0 + 1 - 1])
    ll1 = jax.scipy.special.logsumexp(ll2, axis=0) - math.log(gaussian_2sb.shape[1])
    res = jnp.where(na < 1.0, -9999.0, ll1)
    return jnp.where(jnp.sum(na) < 1.0, jnp.full_like(res, -9999.0), res)


if __name__ == "__main__":
    key = jax.random.PRNGKey(0)

    # Deterministic parameter init, matching the module's __init__.
    w = jnp.array([[1.7, 0.0], [0.0, 1.7]], dtype=jnp.float32)
    b = jnp.array([-0.1, -0.1], dtype=jnp.float32)

    # --- small case (module-sized shapes) -----------------------------------
    batch = 8
    num_samples = 128  # the module's `num_samples` Monte-Carlo draws
    k1, k2, k3, k4, k5 = jax.random.split(key, 5)
    tumor_alt = jnp.floor(jax.random.uniform(k1, (batch,), minval=0.0, maxval=20.0))
    tumor_ref = jnp.floor(jax.random.uniform(k2, (batch,), minval=0.0, maxval=50.0))
    normal_alt = jnp.floor(jax.random.uniform(k3, (batch,), minval=0.0, maxval=4.0))
    normal_ref = jnp.floor(jax.random.uniform(k4, (batch,), minval=0.0, maxval=50.0))
    gaussian = jax.random.normal(k5, (2, num_samples, batch), dtype=jnp.float32)

    out = normal_artifact_spectrum_forward(
        w, b, tumor_alt, tumor_ref, normal_alt, normal_ref, gaussian)
    out = jax.block_until_ready(out)
    ref = _reference_forward(w, b, tumor_alt, tumor_ref, normal_alt, normal_ref,
                             gaussian)
    assert out.shape == (batch,)
    assert jnp.allclose(out, ref, rtol=1e-4, atol=1e-3), (out, ref)

    # --- degenerate branch: sum(normal_alt) < 1 -> all -9999 ----------------
    out_deg = normal_artifact_spectrum_forward(
        w, b, tumor_alt, tumor_ref, jnp.zeros_like(normal_alt), normal_ref,
        gaussian)
    out_deg = jax.block_until_ready(out_deg)
    assert jnp.allclose(out_deg, -9999.0)

    # --- ragged batch exercising padding + multiple grid steps --------------
    batch2 = 300
    j1, j2, j3, j4, j5 = jax.random.split(jax.random.PRNGKey(1), 5)
    ta2 = jnp.floor(jax.random.uniform(j1, (batch2,), minval=0.0, maxval=20.0))
    tr2 = jnp.floor(jax.random.uniform(j2, (batch2,), minval=0.0, maxval=50.0))
    na2 = jnp.floor(jax.random.uniform(j3, (batch2,), minval=0.0, maxval=4.0))
    nr2 = jnp.floor(jax.random.uniform(j4, (batch2,), minval=0.0, maxval=50.0))
    g2 = jax.random.normal(j5, (2, num_samples, batch2), dtype=jnp.float32)
    out2 = normal_artifact_spectrum_forward(
        w, b, ta2, tr2, na2, nr2, g2, tile_b=128)
    out2 = jax.block_until_ready(out2)
    ref2 = _reference_forward(w, b, ta2, tr2, na2, nr2, g2)
    assert jnp.allclose(out2, ref2, rtol=1e-4, atol=1e-3), (out2, ref2)

    print("KERNEL_OK")
</pallas_src>

<mosaic_0001>
module attributes {stable_mosaic.version = 11 : i64} {
  func.func @kernel(%arg0: i32, %arg1: memref<7xf32, #tpu.memory_space<smem>>, %arg2: memref<4x128xf32, #tpu.memory_space<vmem>>, %arg3: memref<2x128x128xf32, #tpu.memory_space<vmem>>, %arg4: memref<1x128xf32, #tpu.memory_space<vmem>>) attributes {dimension_semantics = [#tpu.dimension_semantics<parallel>], iteration_bounds = array<i64: 1>, scalar_prefetch = 0 : i64, scratch_operands = 0 : i64, tpu.core_type = #tpu.core_type<tc>, window_params = [{transform_indices = @transform_0, window_bounds = array<i64: 7>}, {transform_indices = @transform_1, window_bounds = array<i64: 4, 128>}, {transform_indices = @transform_2, window_bounds = array<i64: 2, 128, 128>}, {transform_indices = @transform_3, window_bounds = array<i64: 1, 128>}]} {
    %c6 = arith.constant 6 : index
    %0 = memref.load %arg1[%c6] : memref<7xf32, #tpu.memory_space<smem>>
    %cst = arith.constant 5.000000e-01 : f32
    %1 = arith.cmpf ogt, %0, %cst : f32
    %2 = arith.extui %1 : i1 to i32
    %c0_i32 = arith.constant 0 : i32
    %3 = arith.cmpi ne, %2, %c0_i32 : i32
    scf.if %3 {
      %c0 = arith.constant 0 : index
      %7 = memref.load %arg1[%c0] : memref<7xf32, #tpu.memory_space<smem>>
      %c1 = arith.constant 1 : index
      %8 = memref.load %arg1[%c1] : memref<7xf32, #tpu.memory_space<smem>>
      %c2 = arith.constant 2 : index
      %9 = memref.load %arg1[%c2] : memref<7xf32, #tpu.memory_space<smem>>
      %c3 = arith.constant 3 : index
      %10 = memref.load %arg1[%c3] : memref<7xf32, #tpu.memory_space<smem>>
      %c4 = arith.constant 4 : index
      %11 = memref.load %arg1[%c4] : memref<7xf32, #tpu.memory_space<smem>>
      %c5 = arith.constant 5 : index
      %12 = memref.load %arg1[%c5] : memref<7xf32, #tpu.memory_space<smem>>
      %c0_1 = arith.constant 0 : index
      %c0_2 = arith.constant 0 : index
      %c0_3 = arith.constant 0 : index
      %13 = vector.load %arg3[%c0_1, %c0_2, %c0_3] : memref<2x128x128xf32, #tpu.memory_space<vmem>>, vector<1x128x128xf32>
      %14 = vector.shape_cast %13 : vector<1x128x128xf32> to vector<128x128xf32>
      %c1_4 = arith.constant 1 : index
      %c0_5 = arith.constant 0 : index
      %c0_6 = arith.constant 0 : index
      %15 = vector.load %arg3[%c1_4, %c0_5, %c0_6] : memref<2x128x128xf32, #tpu.memory_space<vmem>>, vector<1x128x128xf32>
      %16 = vector.shape_cast %15 : vector<1x128x128xf32> to vector<128x128xf32>
      %17 = vector.broadcast %7 : f32 to vector<128x128xf32>
      %18 = arith.mulf %14, %17 : vector<128x128xf32>
      %19 = vector.broadcast %8 : f32 to vector<128x128xf32>
      %20 = arith.mulf %16, %19 : vector<128x128xf32>
      %21 = arith.addf %18, %20 : vector<128x128xf32>
      %22 = vector.broadcast %11 : f32 to vector<128x128xf32>
      %23 = arith.addf %21, %22 : vector<128x128xf32>
      %24 = vector.broadcast %9 : f32 to vector<128x128xf32>
      %25 = arith.mulf %14, %24 : vector<128x128xf32>
      %26 = vector.broadcast %10 : f32 to vector<128x128xf32>
      %27 = arith.mulf %16, %26 : vector<128x128xf32>
      %28 = arith.addf %25, %27 : vector<128x128xf32>
      %29 = vector.broadcast %12 : f32 to vector<128x128xf32>
      %30 = arith.addf %28, %29 : vector<128x128xf32>
      %31 = arith.negf %23 : vector<128x128xf32>
      %32 = math.exp %31 : vector<128x128xf32>
      %cst_7 = arith.constant 1.000000e+00 : f32
      %33 = vector.broadcast %cst_7 : f32 to vector<128x128xf32>
      %34 = arith.addf %33, %32 : vector<128x128xf32>
      %35 = arith.divf %33, %34 : vector<128x128xf32>
      %cst_8 = arith.constant 9.980000e-01 : f32
      %36 = vector.broadcast %cst_8 : f32 to vector<128x128xf32>
      %37 = arith.mulf %36, %35 : vector<128x128xf32>
      %cst_9 = arith.constant 1.000000e-03 : f32
      %38 = vector.broadcast %cst_9 : f32 to vector<128x128xf32>
      %39 = arith.addf %38, %37 : vector<128x128xf32>
      %40 = arith.negf %30 : vector<128x128xf32>
      %41 = math.exp %40 : vector<128x128xf32>
      %cst_10 = arith.constant 1.000000e+00 : f32
      %42 = vector.broadcast %cst_10 : f32 to vector<128x128xf32>
      %43 = arith.addf %42, %41 : vector<128x128xf32>
      %44 = arith.divf %42, %43 : vector<128x128xf32>
      %cst_11 = arith.constant 9.980000e-01 : f32
      %45 = vector.broadcast %cst_11 : f32 to vector<128x128xf32>
      %46 = arith.mulf %45, %44 : vector<128x128xf32>
      %cst_12 = arith.constant 1.000000e-03 : f32
      %47 = vector.broadcast %cst_12 : f32 to vector<128x128xf32>
      %48 = arith.addf %47, %46 : vector<128x128xf32>
      %c0_13 = arith.constant 0 : index
      %c0_14 = arith.constant 0 : index
      %49 = vector.load %arg2[%c0_13, %c0_14] : memref<4x128xf32, #tpu.memory_space<vmem>>, vector<4x128xf32>
      %50 = vector.extract_strided_slice %49 {offsets = [0, 0], sizes = [1, 128], strides = [1, 1]} : vector<4x128xf32> to vector<1x128xf32>
      %51 = vector.extract_strided_slice %49 {offsets = [1, 0], sizes = [1, 128], strides = [1, 1]} : vector<4x128xf32> to vector<1x128xf32>
      %52 = vector.extract_strided_slice %49 {offsets = [2, 0], sizes = [1, 128], strides = [1, 1]} : vector<4x128xf32> to vector<1x128xf32>
      %53 = vector.extract_strided_slice %49 {offsets = [3, 0], sizes = [1, 128], strides = [1, 1]} : vector<4x128xf32> to vector<1x128xf32>
      %54 = math.log %39 : vector<128x128xf32>
      %55 = vector.broadcast %50 : vector<1x128xf32> to vector<128x128xf32>
      %56 = arith.mulf %55, %54 : vector<128x128xf32>
      %cst_15 = arith.constant 1.000000e+00 : f32
      %57 = vector.broadcast %cst_15 : f32 to vector<128x128xf32>
      %58 = arith.subf %57, %39 : vector<128x128xf32>
      %59 = math.log %58 : vector<128x128xf32>
      %60 = vector.broadcast %51 : vector<1x128xf32> to vector<128x128xf32>
      %61 = arith.mulf %60, %59 : vector<128x128xf32>
      %62 = arith.addf %56, %61 : vector<128x128xf32>
      %63 = math.log %48 : vector<128x128xf32>
      %64 = vector.broadcast %52 : vector<1x128xf32> to vector<128x128xf32>
      %65 = arith.mulf %64, %63 : vector<128x128xf32>
      %66 = arith.addf %62, %65 : vector<128x128xf32>
      %cst_16 = arith.constant 1.000000e+00 : f32
      %67 = vector.broadcast %cst_16 : f32 to vector<128x128xf32>
      %68 = arith.subf %67, %48 : vector<128x128xf32>
      %69 = math.log %68 : vector<128x128xf32>
      %70 = vector.broadcast %53 : vector<1x128xf32> to vector<128x128xf32>
      %71 = arith.mulf %70, %69 : vector<128x128xf32>
      %72 = arith.addf %66, %71 : vector<128x128xf32>
      %cst_17 = arith.constant dense<0xFF800000> : vector<128xf32>
      %73 = vector.multi_reduction <maximumf>, %72, %cst_17 [0] : vector<128x128xf32> to vector<128xf32>
      %74 = vector.shape_cast %73 : vector<128xf32> to vector<1x128xf32>
      %75 = vector.broadcast %74 : vector<1x128xf32> to vector<128x128xf32>
      %76 = arith.subf %72, %75 : vector<128x128xf32>
      %77 = math.exp %76 : vector<128x128xf32>
      %cst_18 = arith.constant dense<0.000000e+00> : vector<128xf32>
      %78 = vector.multi_reduction <add>, %77, %cst_18 [0] : vector<128x128xf32> to vector<128xf32>
      %79 = vector.shape_cast %78 : vector<128xf32> to vector<1x128xf32>
      %80 = math.log %79 : vector<1x128xf32>
      %81 = arith.addf %74, %80 : vector<1x128xf32>
      %cst_19 = arith.constant 4.85203028 : f32
      %82 = vector.broadcast %cst_19 : f32 to vector<1x128xf32>
      %83 = arith.subf %81, %82 : vector<1x128xf32>
      %cst_20 = arith.constant 1.000000e+00 : f32
      %84 = vector.broadcast %cst_20 : f32 to vector<1x128xf32>
      %85 = arith.cmpf olt, %52, %84 : vector<1x128xf32>
      %cst_21 = arith.constant -9.999000e+03 : f32
      %86 = vector.broadcast %cst_21 : f32 to vector<1x128xf32>
      %87 = arith.select %85, %86, %83 : vector<1x128xi1>, vector<1x128xf32>
      %c0_22 = arith.constant 0 : index
      %c0_23 = arith.constant 0 : index
      %88 = vector.load %arg4[%c0_22, %c0_23] : memref<1x128xf32, #tpu.memory_space<vmem>>, vector<1x128xf32>
      tpu.vector_store %arg4[%c0_22, %c0_23], %87 {strides = array<i32>} : memref<1x128xf32, #tpu.memory_space<vmem>>, vector<1x128xf32>,
    } else {
    }
    %true = arith.constant true
    %4 = arith.xori %1, %true : i1
    %5 = arith.extui %4 : i1 to i32
    %c0_i32_0 = arith.constant 0 : i32
    %6 = arith.cmpi ne, %5, %c0_i32_0 : i32
    scf.if %6 {
      %cst_1 = arith.constant -9.999000e+03 : f32
      %7 = vector.broadcast %cst_1 : f32 to vector<1x128xf32>
      %c0 = arith.constant 0 : index
      %c0_2 = arith.constant 0 : index
      %8 = vector.load %arg4[%c0, %c0_2] : memref<1x128xf32, #tpu.memory_space<vmem>>, vector<1x128xf32>
      tpu.vector_store %arg4[%c0, %c0_2], %7 {strides = array<i32>} : memref<1x128xf32, #tpu.memory_space<vmem>>, vector<1x128xf32>,
    } else {
    }
    return
  }
  func.func @transform_0(%arg0: i32) -> i32 {
    %c0_i32 = arith.constant 0 : i32
    %c0_i32_0 = arith.constant 0 : i32
    return %c0_i32 : i32
  }
  func.func @transform_1(%arg0: i32) -> (i32, i32) {
    %c0_i32 = arith.constant 0 : i32
    %c0_i32_0 = arith.constant 0 : i32
    return %c0_i32, %arg0 : i32, i32
  }
  func.func @transform_2(%arg0: i32) -> (i32, i32, i32) {
    %c0_i32 = arith.constant 0 : i32
    %c0_i32_0 = arith.constant 0 : i32
    %c0_i32_1 = arith.constant 0 : i32
    return %c0_i32, %c0_i32_0, %arg0 : i32, i32, i32
  }
  func.func @transform_3(%arg0: i32) -> (i32, i32) {
    %c0_i32 = arith.constant 0 : i32
    %c0_i32_0 = arith.constant 0 : i32
    return %c0_i32, %arg0 : i32, i32
  }
}

</mosaic_0001>

<llo_original>
// kernel: tpu_custom_call.1
$region0: #{tpu_custom_call.1}
  #allocation0 [shape = 'u32[]', space=smem, size = 0x4, offset = 0x4, fixed_abs, tag = 'smem constant byte address 0x4 - core index']
  #allocation1 [shape = 'u32[72,128]{1,0:T(1,128)}', space=vmem, size = 0x9000, scoped, tag = 'internal scratch']
  %s0 = inlined_call_operand.hbm [shape: f32[7], index: 0, kind: input, shape index: {}]
  %s1 = inlined_call_operand.hbm [shape: f32[4,128], index: 1, kind: input, shape index: {}]
  %s2 = inlined_call_operand.hbm [shape: f32[2,128,128], index: 2, kind: input, shape index: {}]
  %s3 = inlined_call_operand.hbm [shape: f32[1,128], index: 3, kind: output, shape index: {}]
  %s4 = sld [smem:[#allocation0]]
  $region42: #{tpu_custom_call.1} parent=0
    _
  %s6 = ssub.s32 1, %s4
  %s7 = scalar_select 0, %s6, %s4
  $region1: #{tpu_custom_call.1} parent=0
    #allocation2 [shape = 'u8[512]{0}', space=smem, size = 0x200, scoped, tag = 'input window, operand 0, single buffered']
    #allocation3 [shape = 's32[1]{0}', space=sflag, size = 0x4, scoped, tag = 'scoped memory for tpu_custom_call.1']
    #allocation4 [shape = 's32[1]{0}', space=sflag, size = 0x4, scoped, tag = 'scoped memory for tpu_custom_call.1']
    #allocation5 [shape = 's32[1]{0}', space=sflag, size = 0x4, scoped, tag = 'scoped memory for tpu_custom_call.1']
    #allocation6 [shape = 'u8[2048]{0}', space=vmem, size = 0x800, scoped, tag = 'input window, operand 1, single buffered']
    #allocation7 [shape = 'u8[131072]{0}', space=vmem, size = 0x20000, scoped, tag = 'input window, operand 2, single buffered']
    #allocation8 [shape = 's32[1]{0}', space=sflag, size = 0x4, scoped, tag = 'scoped memory for tpu_custom_call.1']
    #allocation9 [shape = 'u8[512]{0}', space=vmem, size = 0x400, scoped, tag = 'output window, operand 0, single buffered']
    %8 = vsyncpa [#allocation5], 0
    %9 = vsyncpa [#allocation3], 0
    %10 = vsyncpa [#allocation8], 0
    %11 = vsyncpa [#allocation4], 0
    // Predicated region
    $region2: #{tpu_custom_call.1} parent=1 // pred_check
      _
    $region3: #{tpu_custom_call.1} parent=1 // pred_check_branch
      %13 = sbr.rel (0) target = $region5
    $region4: #{tpu_custom_call.1} parent=1 // pred_region
      %15 = vsyncadd [#allocation5], 0
      %s17 = sshll.u32 %s0, 4
      %s18 = int_to_ptr.hbm [resolvable:$true] %s17
      %20 = dma.hbm_to_smem %s18, 16, [#allocation2], [#allocation5]
    $region5: #{tpu_custom_call.1} parent=1 // pred_fallthru
      _
    // Predicated region
    $region6: #{tpu_custom_call.1} parent=1 // pred_check
      _
    $region7: #{tpu_custom_call.1} parent=1 // pred_check_branch
      %22 = sbr.rel (0) target = $region9
    $region8: #{tpu_custom_call.1} parent=1 // pred_region
      %24 = vsyncadd [#allocation3], 0
      %s26 = sshll.u32 %s1, 4
      %s27 = int_to_ptr.hbm [resolvable:$true] %s26
      %s28 = sshll.u32 [#allocation6], 4
      %s29 = int_to_ptr.vmem [resolvable:$true] %s28
      %31 = dma.hbm_to_vmem [thread:$0]  %s27, 64, %s29, [#allocation3]
    $region9: #{tpu_custom_call.1} parent=1 // pred_fallthru
      _
    // Predicated region
    $region10: #{tpu_custom_call.1} parent=1 // pred_check
      _
    $region11: #{tpu_custom_call.1} parent=1 // pred_check_branch
      %33 = sbr.rel (0) target = $region13
    $region12: #{tpu_custom_call.1} parent=1 // pred_region
      %35 = vsyncadd [#allocation8], 0
      %s36 = sshll.u32 %s2, 4
      %s37 = int_to_ptr.hbm [resolvable:$true] %s36
      %s38 = sshll.u32 [#allocation7], 4
      %s39 = int_to_ptr.vmem [resolvable:$true] %s38
      %44 = dma.hbm_to_vmem [thread:$0]  %s37, 4096, %s39, [#allocation8], 128, 128, 8
    $region13: #{tpu_custom_call.1} parent=1 // pred_fallthru
      _
    // Predicated region
    $region14: #{tpu_custom_call.1} parent=1 // pred_check
      _
    $region15: #{tpu_custom_call.1} parent=1 // pred_check_branch
      %46 = sbr.rel (0) target = $region17
    $region16: #{tpu_custom_call.1} parent=1 // pred_region
      %48 = dma.done [#allocation5], 16
    $region17: #{tpu_custom_call.1} parent=1 // pred_fallthru
      _
    // Predicated region
    $region18: #{tpu_custom_call.1} parent=1 // pred_check
      _
    $region19: #{tpu_custom_call.1} parent=1 // pred_check_branch
      %50 = sbr.rel (0) target = $region21
    $region20: #{tpu_custom_call.1} parent=1 // pred_region
      %52 = dma.done [#allocation3], 64
    $region21: #{tpu_custom_call.1} parent=1 // pred_fallthru
      _
    // Predicated region
    $region22: #{tpu_custom_call.1} parent=1 // pred_check
      _
    $region23: #{tpu_custom_call.1} parent=1 // pred_check_branch
      %54 = sbr.rel (0) target = $region25
    $region24: #{tpu_custom_call.1} parent=1 // pred_region
      %56 = dma.done [#allocation8], 4096
    $region25: #{tpu_custom_call.1} parent=1 // pred_fallthru
      _
    %57 = sfence
    %s58 = sld [smem:[#allocation2 + $0x6]]
    %p59 = scmp.gt.f32.partialorder %s58, 0.5
    // Predicated region
    $region26: #{tpu_custom_call.1} parent=1 // pred_check
      %p60 = pneg %p59
    $region27: #{tpu_custom_call.1} parent=1 // pred_check_branch
      %62 = sbr.rel (%p60) target = $region29
    $region28: #{tpu_custom_call.1} parent=1 // pred_region
      %s63 = sld [smem:[#allocation2]]
      %s64 = sld [smem:[#allocation2 + $0x1]]
      %s65 = sld [smem:[#allocation2 + $0x2]]
      %s66 = sld [smem:[#allocation2 + $0x3]]
      %s67 = sld [smem:[#allocation2 + $0x4]]
      %s68 = sld [smem:[#allocation2 + $0x5]]
      %v69 = vld [vmem:[#allocation7] sm:$0xff]
      %v70 = vld [vmem:[#allocation7 + $0x8] sm:$0xff]
      %v71 = vld [vmem:[#allocation7 + $0x10] sm:$0xff]
      %v72 = vld [vmem:[#allocation7 + $0x18] sm:$0xff]
      %v73 = vld [vmem:[#allocation7 + $0x20] sm:$0xff]
      %v74 = vld [vmem:[#allocation7 + $0x28] sm:$0xff]
      %v75 = vld [vmem:[#allocation7 + $0x30] sm:$0xff]
      %v76 = vld [vmem:[#allocation7 + $0x38] sm:$0xff]
      %v77 = vld [vmem:[#allocation7 + $0x40] sm:$0xff]
      %v78 = vld [vmem:[#allocation7 + $0x48] sm:$0xff]
      %v79 = vld [vmem:[#allocation7 + $0x50] sm:$0xff]
      %v80 = vld [vmem:[#allocation7 + $0x58] sm:$0xff]
      %v81 = vld [vmem:[#allocation7 + $0x60] sm:$0xff]
      %v82 = vld [vmem:[#allocation7 + $0x68] sm:$0xff]
      %v83 = vld [vmem:[#allocation7 + $0x70] sm:$0xff]
      %v84 = vld [vmem:[#allocation7 + $0x78] sm:$0xff]
      %s85 = scalar_lea.vmem [#allocation7], 128
      %v86 = vld [vmem:[%s85] sm:$0xff]
      %v87 = vld [vmem:[%s85 + $0x8] sm:$0xff]
      %v88 = vld [vmem:[%s85 + $0x10] sm:$0xff]
      %v89 = vld [vmem:[%s85 + $0x18] sm:$0xff]
      %v90 = vld [vmem:[%s85 + $0x20] sm:$0xff]
      %v91 = vld [vmem:[%s85 + $0x28] sm:$0xff]
      %v92 = vld [vmem:[%s85 + $0x30] sm:$0xff]
      %v93 = vld [vmem:[%s85 + $0x38] sm:$0xff]
      %v94 = vld [vmem:[%s85 + $0x40] sm:$0xff]
      %v95 = vld [vmem:[%s85 + $0x48] sm:$0xff]
      %v96 = vld [vmem:[%s85 + $0x50] sm:$0xff]
      %v97 = vld [vmem:[%s85 + $0x58] sm:$0xff]
      %v98 = vld [vmem:[%s85 + $0x60] sm:$0xff]
      %v99 = vld [vmem:[%s85 + $0x68] sm:$0xff]
      %v100 = vld [vmem:[%s85 + $0x70] sm:$0xff]
      %v101 = vld [vmem:[%s85 + $0x78] sm:$0xff]
      %v102 = vstv %s63
      %v103 = vmul.f32 %v69, %v102
      %v104 = vmul.f32 %v70, %v102
      %v105 = vmul.f32 %v71, %v102
      %v106 = vmul.f32 %v72, %v102
      %v107 = vmul.f32 %v73, %v102
      %v108 = vmul.f32 %v74, %v102
      %v109 = vmul.f32 %v75, %v102
      %v110 = vmul.f32 %v76, %v102
      %v111 = vmul.f32 %v77, %v102
      %v112 = vmul.f32 %v78, %v102
      %v113 = vmul.f32 %v79, %v102
      %v114 = vmul.f32 %v80, %v102
      %v115 = vmul.f32 %v81, %v102
      %v116 = vmul.f32 %v82, %v102
      %v117 = vmul.f32 %v83, %v102
      %v118 = vmul.f32 %v84, %v102
      %v119 = vstv %s64
      %v120 = vmul.f32 %v86, %v119
      %v121 = vmul.f32 %v87, %v119
      %v122 = vmul.f32 %v88, %v119
      %v123 = vmul.f32 %v89, %v119
      %v124 = vmul.f32 %v90, %v119
      %v125 = vmul.f32 %v91, %v119
      %v126 = vmul.f32 %v92, %v119
      %v127 = vmul.f32 %v93, %v119
      %v128 = vmul.f32 %v94, %v119
      %v129 = vmul.f32 %v95, %v119
      %v130 = vmul.f32 %v96, %v119
      %v131 = vmul.f32 %v97, %v119
      %v132 = vmul.f32 %v98, %v119
      %v133 = vmul.f32 %v99, %v119
      %v134 = vmul.f32 %v100, %v119
      %v135 = vmul.f32 %v101, %v119
      %v136 = vadd.f32 %v103, %v120
      %v137 = vadd.f32 %v104, %v121
      %v138 = vadd.f32 %v105, %v122
      %v139 = vadd.f32 %v106, %v123
      %v140 = vadd.f32 %v107, %v124
      %v141 = vadd.f32 %v108, %v125
      %v142 = vadd.f32 %v109, %v126
      %v143 = vadd.f32 %v110, %v127
      %v144 = vadd.f32 %v111, %v128
      %v145 = vadd.f32 %v112, %v129
      %v146 = vadd.f32 %v113, %v130
      %v147 = vadd.f32 %v114, %v131
      %v148 = vadd.f32 %v115, %v132
      %v149 = vadd.f32 %v116, %v133
      %v150 = vadd.f32 %v117, %v134
      %v151 = vadd.f32 %v118, %v135
      %v152 = vstv %s67
      %v153 = vadd.f32 %v136, %v152
      %v154 = vadd.f32 %v137, %v152
      %v155 = vadd.f32 %v138, %v152
      %v156 = vadd.f32 %v139, %v152
      %v157 = vadd.f32 %v140, %v152
      %v158 = vadd.f32 %v141, %v152
      %v159 = vadd.f32 %v142, %v152
      %v160 = vadd.f32 %v143, %v152
      %v161 = vadd.f32 %v144, %v152
      %v162 = vadd.f32 %v145, %v152
      %v163 = vadd.f32 %v146, %v152
      %v164 = vadd.f32 %v147, %v152
      %v165 = vadd.f32 %v148, %v152
      %v166 = vadd.f32 %v149, %v152
      %v167 = vadd.f32 %v150, %v152
      %v168 = vadd.f32 %v151, %v152
      %v169 = vstv %s65
      %v170 = vmul.f32 %v69, %v169
      %v171 = vmul.f32 %v70, %v169
      %v172 = vmul.f32 %v71, %v169
      %v173 = vmul.f32 %v72, %v169
      %v174 = vmul.f32 %v73, %v169
      %v175 = vmul.f32 %v74, %v169
      %v176 = vmul.f32 %v75, %v169
      %v177 = vmul.f32 %v76, %v169
      %v178 = vmul.f32 %v77, %v169
      %v179 = vmul.f32 %v78, %v169
      %v180 = vmul.f32 %v79, %v169
      %v181 = vmul.f32 %v80, %v169
      %v182 = vmul.f32 %v81, %v169
      %v183 = vmul.f32 %v82, %v169
      %v184 = vmul.f32 %v83, %v169
      %v185 = vmul.f32 %v84, %v169
      %v186 = vstv %s66
      %v187 = vmul.f32 %v86, %v186
      %v188 = vmul.f32 %v87, %v186
      %v189 = vmul.f32 %v88, %v186
      %v190 = vmul.f32 %v89, %v186
      %v191 = vmul.f32 %v90, %v186
      %v192 = vmul.f32 %v91, %v186
      %v193 = vmul.f32 %v92, %v186
      %v194 = vmul.f32 %v93, %v186
      %v195 = vmul.f32 %v94, %v186
      %v196 = vmul.f32 %v95, %v186
      %v197 = vmul.f32 %v96, %v186
      %v198 = vmul.f32 %v97, %v186
      %v199 = vmul.f32 %v98, %v186
      %v200 = vmul.f32 %v99, %v186
      %v201 = vmul.f32 %v100, %v186
      %v202 = vmul.f32 %v101, %v186
      %v203 = vadd.f32 %v170, %v187
      %v204 = vadd.f32 %v171, %v188
      %v205 = vadd.f32 %v172, %v189
      %v206 = vadd.f32 %v173, %v190
      %v207 = vadd.f32 %v174, %v191
      %v208 = vadd.f32 %v175, %v192
      %v209 = vadd.f32 %v176, %v193
      %v210 = vadd.f32 %v177, %v194
      %v211 = vadd.f32 %v178, %v195
      %v212 = vadd.f32 %v179, %v196
      %v213 = vadd.f32 %v180, %v197
      %v214 = vadd.f32 %v181, %v198
      %v215 = vadd.f32 %v182, %v199
      %v216 = vadd.f32 %v183, %v200
      %v217 = vadd.f32 %v184, %v201
      %v218 = vadd.f32 %v185, %v202
      %v219 = vstv %s68
      %v220 = vadd.f32 %v203, %v219
      %v221 = vadd.f32 %v204, %v219
      %v222 = vadd.f32 %v205, %v219
      %v223 = vadd.f32 %v206, %v219
      %v224 = vadd.f32 %v207, %v219
      %v225 = vadd.f32 %v208, %v219
      %v226 = vadd.f32 %v209, %v219
      %v227 = vadd.f32 %v210, %v219
      %v228 = vadd.f32 %v211, %v219
      %v229 = vadd.f32 %v212, %v219
      %v230 = vadd.f32 %v213, %v219
      %v231 = vadd.f32 %v214, %v219
      %v232 = vadd.f32 %v215, %v219
      %v233 = vadd.f32 %v216, %v219
      %v234 = vadd.f32 %v217, %v219
      %v235 = vadd.f32 %v218, %v219
      %v236 = vxor.u32 %v153, 2147483648
      %v237 = vxor.u32 %v154, 2147483648
      %v238 = vxor.u32 %v155, 2147483648
      %v239 = vxor.u32 %v156, 2147483648
      %v240 = vxor.u32 %v157, 2147483648
      %v241 = vxor.u32 %v158, 2147483648
      %v242 = vxor.u32 %v159, 2147483648
      %v243 = vxor.u32 %v160, 2147483648
      %v244 = vxor.u32 %v161, 2147483648
      %v245 = vxor.u32 %v162, 2147483648
      %v246 = vxor.u32 %v163, 2147483648
      %v247 = vxor.u32 %v164, 2147483648
      %v248 = vxor.u32 %v165, 2147483648
      %v249 = vxor.u32 %v166, 2147483648
      %v250 = vxor.u32 %v167, 2147483648
      %v251 = vxor.u32 %v168, 2147483648
      %v252 = vmul.f32 %v236, 1.442695
      %v253 = vpow.pop %v252
      %v254 = vmul.f32 %v237, 1.442695
      %v255 = vpow.pop %v254
      %v256 = vmul.f32 %v238, 1.442695
      %v257 = vpow.pop %v256
      %v258 = vmul.f32 %v239, 1.442695
      %v259 = vpow.pop %v258
      %v260 = vmul.f32 %v240, 1.442695
      %v261 = vpow.pop %v260
      %v262 = vmul.f32 %v241, 1.442695
      %v263 = vpow.pop %v262
      %v264 = vmul.f32 %v242, 1.442695
      %v265 = vpow.pop %v264
      %v266 = vmul.f32 %v243, 1.442695
      %v267 = vpow.pop %v266
      %v268 = vmul.f32 %v244, 1.442695
      %v269 = vpow.pop %v268
      %v270 = vmul.f32 %v245, 1.442695
      %v271 = vpow.pop %v270
      %v272 = vmul.f32 %v246, 1.442695
      %v273 = vpow.pop %v272
      %v274 = vmul.f32 %v247, 1.442695
      %v275 = vpow.pop %v274
      %v276 = vmul.f32 %v248, 1.442695
      %v277 = vpow.pop %v276
      %v278 = vmul.f32 %v249, 1.442695
      %v279 = vpow.pop %v278
      %v280 = vmul.f32 %v250, 1.442695
      %v281 = vpow.pop %v280
      %v282 = vmul.f32 %v251, 1.442695
      %v283 = vpow.pop %v282
      %v284 = vadd.f32 %v253, 1.0
      %v285 = vadd.f32 %v255, 1.0
      %v286 = vadd.f32 %v257, 1.0
      %v287 = vadd.f32 %v259, 1.0
      %v288 = vadd.f32 %v261, 1.0
      %v289 = vadd.f32 %v263, 1.0
      %v290 = vadd.f32 %v265, 1.0
      %v291 = vadd.f32 %v267, 1.0
      %v292 = vadd.f32 %v269, 1.0
      %v293 = vadd.f32 %v271, 1.0
      %v294 = vadd.f32 %v273, 1.0
      %v295 = vadd.f32 %v275, 1.0
      %v296 = vadd.f32 %v277, 1.0
      %v297 = vadd.f32 %v279, 1.0
      %v298 = vadd.f32 %v281, 1.0
      %v299 = vadd.f32 %v283, 1.0
      %v300 = vrcp.pop %v284
      %v301 = vmul.f32 %v284, %v300
      %v302 = vsub.f32 1.0, %v301
      %v303 = vmul.f32 %v300, %v302
      %v304 = vadd.f32 %v300, %v303
      %vm305 = vweird.f32 %v284
      %vm306 = vweird.f32 %v300
      %vm307 = vmor %vm305, %vm306
      %v308 = vsel %vm307, %v300, %v304
      %v309 = vand.u32 2147483647, %v284
      %vm310 = vcmp.eq.f32.partialorder %v309, 8.507059e+37
      %v311 = vand.u32 %v284, 2147483648
      %v312 = vor.u32 1.1754944e-38, %v311
      %v313 = vsel %vm310, %v312, %v308
      %v314 = vmul.f32 1.0, %v313
      %v315 = vrcp.pop %v285
      %v316 = vmul.f32 %v285, %v315
      %v317 = vsub.f32 1.0, %v316
      %v318 = vmul.f32 %v315, %v317
      %v319 = vadd.f32 %v315, %v318
      %vm320 = vweird.f32 %v285
      %vm321 = vweird.f32 %v315
      %vm322 = vmor %vm320, %vm321
      %v323 = vsel %vm322, %v315, %v319
      %v324 = vand.u32 2147483647, %v285
      %vm325 = vcmp.eq.f32.partialorder %v324, 8.507059e+37
      %v326 = vand.u32 %v285, 2147483648
      %v327 = vor.u32 1.1754944e-38, %v326
      %v328 = vsel %vm325, %v327, %v323
      %v329 = vmul.f32 1.0, %v328
      %v330 = vrcp.pop %v286
      %v331 = vmul.f32 %v286, %v330
      %v332 = vsub.f32 1.0, %v331
      %v333 = vmul.f32 %v330, %v332
      %v334 = vadd.f32 %v330, %v333
      %vm335 = vweird.f32 %v286
      %vm336 = vweird.f32 %v330
      %vm337 = vmor %vm335, %vm336
      %v338 = vsel %vm337, %v330, %v334
      %v339 = vand.u32 2147483647, %v286
      %vm340 = vcmp.eq.f32.partialorder %v339, 8.507059e+37
      %v341 = vand.u32 %v286, 2147483648
      %v342 = vor.u32 1.1754944e-38, %v341
      %v343 = vsel %vm340, %v342, %v338
      %v344 = vmul.f32 1.0, %v343
      %v345 = vrcp.pop %v287
      %v346 = vmul.f32 %v287, %v345
      %v347 = vsub.f32 1.0, %v346
      %v348 = vmul.f32 %v345, %v347
      %v349 = vadd.f32 %v345, %v348
      %vm350 = vweird.f32 %v287
      %vm351 = vweird.f32 %v345
      %vm352 = vmor %vm350, %vm351
      %v353 = vsel %vm352, %v345, %v349
      %v354 = vand.u32 2147483647, %v287
      %vm355 = vcmp.eq.f32.partialorder %v354, 8.507059e+37
      %v356 = vand.u32 %v287, 2147483648
      %v357 = vor.u32 1.1754944e-38, %v356
      %v358 = vsel %vm355, %v357, %v353
      %v359 = vmul.f32 1.0, %v358
      %v360 = vrcp.pop %v288
      %v361 = vmul.f32 %v288, %v360
      %v362 = vsub.f32 1.0, %v361
      %v363 = vmul.f32 %v360, %v362
      %v364 = vadd.f32 %v360, %v363
      %vm365 = vweird.f32 %v288
      %vm366 = vweird.f32 %v360
      %vm367 = vmor %vm365, %vm366
      %v368 = vsel %vm367, %v360, %v364
      %v369 = vand.u32 2147483647, %v288
      %vm370 = vcmp.eq.f32.partialorder %v369, 8.507059e+37
      %v371 = vand.u32 %v288, 2147483648
      %v372 = vor.u32 1.1754944e-38, %v371
      %v373 = vsel %vm370, %v372, %v368
      %v374 = vmul.f32 1.0, %v373
      %v375 = vrcp.pop %v289
      %v376 = vmul.f32 %v289, %v375
      %v377 = vsub.f32 1.0, %v376
      %v378 = vmul.f32 %v375, %v377
      %v379 = vadd.f32 %v375, %v378
      %vm380 = vweird.f32 %v289
      %vm381 = vweird.f32 %v375
      %vm382 = vmor %vm380, %vm381
      %v383 = vsel %vm382, %v375, %v379
      %v384 = vand.u32 2147483647, %v289
      %vm385 = vcmp.eq.f32.partialorder %v384, 8.507059e+37
      %v386 = vand.u32 %v289, 2147483648
      %v387 = vor.u32 1.1754944e-38, %v386
      %v388 = vsel %vm385, %v387, %v383
      %v389 = vmul.f32 1.0, %v388
      %v390 = vrcp.pop %v290
      %v391 = vmul.f32 %v290, %v390
      %v392 = vsub.f32 1.0, %v391
      %v393 = vmul.f32 %v390, %v392
      %v394 = vadd.f32 %v390, %v393
      %vm395 = vweird.f32 %v290
      %vm396 = vweird.f32 %v390
      %vm397 = vmor %vm395, %vm396
      %v398 = vsel %vm397, %v390, %v394
      %v399 = vand.u32 2147483647, %v290
      %vm400 = vcmp.eq.f32.partialorder %v399, 8.507059e+37
      %v401 = vand.u32 %v290, 2147483648
      %v402 = vor.u32 1.1754944e-38, %v401
      %v403 = vsel %vm400, %v402, %v398
      %v404 = vmul.f32 1.0, %v403
      %v405 = vrcp.pop %v291
      %v406 = vmul.f32 %v291, %v405
      %v407 = vsub.f32 1.0, %v406
      %v408 = vmul.f32 %v405, %v407
      %v409 = vadd.f32 %v405, %v408
      %vm410 = vweird.f32 %v291
      %vm411 = vweird.f32 %v405
      %vm412 = vmor %vm410, %vm411
      %v413 = vsel %vm412, %v405, %v409
      %v414 = vand.u32 2147483647, %v291
      %vm415 = vcmp.eq.f32.partialorder %v414, 8.507059e+37
      %v416 = vand.u32 %v291, 2147483648
      %v417 = vor.u32 1.1754944e-38, %v416
      %v418 = vsel %vm415, %v417, %v413
      %v419 = vmul.f32 1.0, %v418
      %v420 = vrcp.pop %v292
      %v421 = vmul.f32 %v292, %v420
      %v422 = vsub.f32 1.0, %v421
      %v423 = vmul.f32 %v420, %v422
      %v424 = vadd.f32 %v420, %v423
      %vm425 = vweird.f32 %v292
      %vm426 = vweird.f32 %v420
      %vm427 = vmor %vm425, %vm426
      %v428 = vsel %vm427, %v420, %v424
      %v429 = vand.u32 2147483647, %v292
      %vm430 = vcmp.eq.f32.partialorder %v429, 8.507059e+37
      %v431 = vand.u32 %v292, 2147483648
      %v432 = vor.u32 1.1754944e-38, %v431
      %v433 = vsel %vm430, %v432, %v428
      %v434 = vmul.f32 1.0, %v433
      %v435 = vrcp.pop %v293
      %v436 = vmul.f32 %v293, %v435
      %v437 = vsub.f32 1.0, %v436
      %v438 = vmul.f32 %v435, %v437
      %v439 = vadd.f32 %v435, %v438
      %vm440 = vweird.f32 %v293
      %vm441 = vweird.f32 %v435
      %vm442 = vmor %vm440, %vm441
      %v443 = vsel %vm442, %v435, %v439
      %v444 = vand.u32 2147483647, %v293
      %vm445 = vcmp.eq.f32.partialorder %v444, 8.507059e+37
      %v446 = vand.u32 %v293, 2147483648
      %v447 = vor.u32 1.1754944e-38, %v446
      %v448 = vsel %vm445, %v447, %v443
      %v449 = vmul.f32 1.0, %v448
      %v450 = vrcp.pop %v294
      %v451 = vmul.f32 %v294, %v450
      %v452 = vsub.f32 1.0, %v451
      %v453 = vmul.f32 %v450, %v452
      %v454 = vadd.f32 %v450, %v453
      %vm455 = vweird.f32 %v294
      %vm456 = vweird.f32 %v450
      %vm457 = vmor %vm455, %vm456
      %v458 = vsel %vm457, %v450, %v454
      %v459 = vand.u32 2147483647, %v294
      %vm460 = vcmp.eq.f32.partialorder %v459, 8.507059e+37
      %v461 = vand.u32 %v294, 2147483648
      %v462 = vor.u32 1.1754944e-38, %v461
      %v463 = vsel %vm460, %v462, %v458
      %v464 = vmul.f32 1.0, %v463
      %v465 = vrcp.pop %v295
      %v466 = vmul.f32 %v295, %v465
      %v467 = vsub.f32 1.0, %v466
      %v468 = vmul.f32 %v465, %v467
      %v469 = vadd.f32 %v465, %v468
      %vm470 = vweird.f32 %v295
      %vm471 = vweird.f32 %v465
      %vm472 = vmor %vm470, %vm471
      %v473 = vsel %vm472, %v465, %v469
      %v474 = vand.u32 2147483647, %v295
      %vm475 = vcmp.eq.f32.partialorder %v474, 8.507059e+37
      %v476 = vand.u32 %v295, 2147483648
      %v477 = vor.u32 1.1754944e-38, %v476
      %v478 = vsel %vm475, %v477, %v473
      %v479 = vmul.f32 1.0, %v478
      %v480 = vrcp.pop %v296
      %v481 = vmul.f32 %v296, %v480
      %v482 = vsub.f32 1.0, %v481
      %v483 = vmul.f32 %v480, %v482
      %v484 = vadd.f32 %v480, %v483
      %vm485 = vweird.f32 %v296
      %vm486 = vweird.f32 %v480
      %vm487 = vmor %vm485, %vm486
      %v488 = vsel %vm487, %v480, %v484
      %v489 = vand.u32 2147483647, %v296
      %vm490 = vcmp.eq.f32.partialorder %v489, 8.507059e+37
      %v491 = vand.u32 %v296, 2147483648
      %v492 = vor.u32 1.1754944e-38, %v491
      %v493 = vsel %vm490, %v492, %v488
      %v494 = vmul.f32 1.0, %v493
      %v495 = vrcp.pop %v297
      %v496 = vmul.f32 %v297, %v495
      %v497 = vsub.f32 1.0, %v496
      %v498 = vmul.f32 %v495, %v497
      %v499 = vadd.f32 %v495, %v498
      %vm500 = vweird.f32 %v297
      %vm501 = vweird.f32 %v495
      %vm502 = vmor %vm500, %vm501
      %v503 = vsel %vm502, %v495, %v499
      %v504 = vand.u32 2147483647, %v297
      %vm505 = vcmp.eq.f32.partialorder %v504, 8.507059e+37
      %v506 = vand.u32 %v297, 2147483648
      %v507 = vor.u32 1.1754944e-38, %v506
      %v508 = vsel %vm505, %v507, %v503
      %v509 = vmul.f32 1.0, %v508
      %v510 = vrcp.pop %v298
      %v511 = vmul.f32 %v298, %v510
      %v512 = vsub.f32 1.0, %v511
      %v513 = vmul.f32 %v510, %v512
      %v514 = vadd.f32 %v510, %v513
      %vm515 = vweird.f32 %v298
      %vm516 = vweird.f32 %v510
      %vm517 = vmor %vm515, %vm516
      %v518 = vsel %vm517, %v510, %v514
      %v519 = vand.u32 2147483647, %v298
      %vm520 = vcmp.eq.f32.partialorder %v519, 8.507059e+37
      %v521 = vand.u32 %v298, 2147483648
      %v522 = vor.u32 1.1754944e-38, %v521
      %v523 = vsel %vm520, %v522, %v518
      %v524 = vmul.f32 1.0, %v523
      %v525 = vrcp.pop %v299
      %v526 = vmul.f32 %v299, %v525
      %v527 = vsub.f32 1.0, %v526
      %v528 = vmul.f32 %v525, %v527
      %v529 = vadd.f32 %v525, %v528
      %vm530 = vweird.f32 %v299
      %vm531 = vweird.f32 %v525
      %vm532 = vmor %vm530, %vm531
      %v533 = vsel %vm532, %v525, %v529
      %v534 = vand.u32 2147483647, %v299
      %vm535 = vcmp.eq.f32.partialorder %v534, 8.507059e+37
      %v536 = vand.u32 %v299, 2147483648
      %v537 = vor.u32 1.1754944e-38, %v536
      %v538 = vsel %vm535, %v537, %v533
      %v539 = vmul.f32 1.0, %v538
      %v540 = vmul.f32 %v314, 0.998
      %v541 = vmul.f32 %v329, 0.998
      %v542 = vmul.f32 %v344, 0.998
      %v543 = vmul.f32 %v359, 0.998
      %v544 = vmul.f32 %v374, 0.998
      %v545 = vmul.f32 %v389, 0.998
      %v546 = vmul.f32 %v404, 0.998
      %v547 = vmul.f32 %v419, 0.998
      %v548 = vmul.f32 %v434, 0.998
      %v549 = vmul.f32 %v449, 0.998
      %v550 = vmul.f32 %v464, 0.998
      %v551 = vmul.f32 %v479, 0.998
      %v552 = vmul.f32 %v494, 0.998
      %v553 = vmul.f32 %v509, 0.998
      %v554 = vmul.f32 %v524, 0.998
      %v555 = vmul.f32 %v539, 0.998
      %v556 = vadd.f32 %v540, 0.001
      %v557 = vadd.f32 %v541, 0.001
      %v558 = vadd.f32 %v542, 0.001
      %v559 = vadd.f32 %v543, 0.001
      %v560 = vadd.f32 %v544, 0.001
      %v561 = vadd.f32 %v545, 0.001
      %v562 = vadd.f32 %v546, 0.001
      %v563 = vadd.f32 %v547, 0.001
      %v564 = vadd.f32 %v548, 0.001
      %v565 = vadd.f32 %v549, 0.001
      %v566 = vadd.f32 %v550, 0.001
      %v567 = vadd.f32 %v551, 0.001
      %v568 = vadd.f32 %v552, 0.001
      %v569 = vadd.f32 %v553, 0.001
      %v570 = vadd.f32 %v554, 0.001
      %v571 = vadd.f32 %v555, 0.001
      %v572 = vxor.u32 %v220, 2147483648
      %v573 = vxor.u32 %v221, 2147483648
      %v574 = vxor.u32 %v222, 2147483648
      %v575 = vxor.u32 %v223, 2147483648
      %v576 = vxor.u32 %v224, 2147483648
      %v577 = vxor.u32 %v225, 2147483648
      %v578 = vxor.u32 %v226, 2147483648
      %v579 = vxor.u32 %v227, 2147483648
      %v580 = vxor.u32 %v228, 2147483648
      %v581 = vxor.u32 %v229, 2147483648
      %v582 = vxor.u32 %v230, 2147483648
      %v583 = vxor.u32 %v231, 2147483648
      %v584 = vxor.u32 %v232, 2147483648
      %v585 = vxor.u32 %v233, 2147483648
      %v586 = vxor.u32 %v234, 2147483648
      %v587 = vxor.u32 %v235, 2147483648
      %v588 = vmul.f32 %v572, 1.442695
      %v589 = vpow.pop %v588
      %v590 = vmul.f32 %v573, 1.442695
      %v591 = vpow.pop %v590
      %v592 = vmul.f32 %v574, 1.442695
      %v593 = vpow.pop %v592
      %v594 = vmul.f32 %v575, 1.442695
      %v595 = vpow.pop %v594
      %v596 = vmul.f32 %v576, 1.442695
      %v597 = vpow.pop %v596
      %v598 = vmul.f32 %v577, 1.442695
      %v599 = vpow.pop %v598
      %v600 = vmul.f32 %v578, 1.442695
      %v601 = vpow.pop %v600
      %v602 = vmul.f32 %v579, 1.442695
      %v603 = vpow.pop %v602
      %v604 = vmul.f32 %v580, 1.442695
      %v605 = vpow.pop %v604
      %v606 = vmul.f32 %v581, 1.442695
      %v607 = vpow.pop %v606
      %v608 = vmul.f32 %v582, 1.442695
      %v609 = vpow.pop %v608
      %v610 = vmul.f32 %v583, 1.442695
      %v611 = vpow.pop %v610
      %v612 = vmul.f32 %v584, 1.442695
      %v613 = vpow.pop %v612
      %v614 = vmul.f32 %v585, 1.442695
      %v615 = vpow.pop %v614
      %v616 = vmul.f32 %v586, 1.442695
      %v617 = vpow.pop %v616
      %v618 = vmul.f32 %v587, 1.442695
      %v619 = vpow.pop %v618
      %v620 = vadd.f32 %v589, 1.0
      %v621 = vadd.f32 %v591, 1.0
      %v622 = vadd.f32 %v593, 1.0
      %v623 = vadd.f32 %v595, 1.0
      %v624 = vadd.f32 %v597, 1.0
      %v625 = vadd.f32 %v599, 1.0
      %v626 = vadd.f32 %v601, 1.0
      %v627 = vadd.f32 %v603, 1.0
      %v628 = vadd.f32 %v605, 1.0
      %v629 = vadd.f32 %v607, 1.0
      %v630 = vadd.f32 %v609, 1.0
      %v631 = vadd.f32 %v611, 1.0
      %v632 = vadd.f32 %v613, 1.0
      %v633 = vadd.f32 %v615, 1.0
      %v634 = vadd.f32 %v617, 1.0
      %v635 = vadd.f32 %v619, 1.0
      %v636 = vrcp.pop %v620
      %v637 = vmul.f32 %v620, %v636
      %v638 = vsub.f32 1.0, %v637
      %v639 = vmul.f32 %v636, %v638
      %v640 = vadd.f32 %v636, %v639
      %vm641 = vweird.f32 %v620
      %vm642 = vweird.f32 %v636
      %vm643 = vmor %vm641, %vm642
      %v644 = vsel %vm643, %v636, %v640
      %v645 = vand.u32 2147483647, %v620
      %vm646 = vcmp.eq.f32.partialorder %v645, 8.507059e+37
      %v647 = vand.u32 %v620, 2147483648
      %v648 = vor.u32 1.1754944e-38, %v647
      %v649 = vsel %vm646, %v648, %v644
      %v650 = vmul.f32 1.0, %v649
      %v651 = vrcp.pop %v621
      %v652 = vmul.f32 %v621, %v651
      %v653 = vsub.f32 1.0, %v652
      %v654 = vmul.f32 %v651, %v653
      %v655 = vadd.f32 %v651, %v654
      %vm656 = vweird.f32 %v621
      %vm657 = vweird.f32 %v651
      %vm658 = vmor %vm656, %vm657
      %v659 = vsel %vm658, %v651, %v655
      %v660 = vand.u32 2147483647, %v621
      %vm661 = vcmp.eq.f32.partialorder %v660, 8.507059e+37
      %v662 = vand.u32 %v621, 2147483648
      %v663 = vor.u32 1.1754944e-38, %v662
      %v664 = vsel %vm661, %v663, %v659
      %v665 = vmul.f32 1.0, %v664
      %v666 = vrcp.pop %v622
      %v667 = vmul.f32 %v622, %v666
      %v668 = vsub.f32 1.0, %v667
      %v669 = vmul.f32 %v666, %v668
      %v670 = vadd.f32 %v666, %v669
      %vm671 = vweird.f32 %v622
      %vm672 = vweird.f32 %v666
      %vm673 = vmor %vm671, %vm672
      %v674 = vsel %vm673, %v666, %v670
      %v675 = vand.u32 2147483647, %v622
      %vm676 = vcmp.eq.f32.partialorder %v675, 8.507059e+37
      %v677 = vand.u32 %v622, 2147483648
      %v678 = vor.u32 1.1754944e-38, %v677
      %v679 = vsel %vm676, %v678, %v674
      %v680 = vmul.f32 1.0, %v679
      %v681 = vrcp.pop %v623
      %v682 = vmul.f32 %v623, %v681
      %v683 = vsub.f32 1.0, %v682
      %v684 = vmul.f32 %v681, %v683
      %v685 = vadd.f32 %v681, %v684
      %vm686 = vweird.f32 %v623
      %vm687 = vweird.f32 %v681
      %vm688 = vmor %vm686, %vm687
      %v689 = vsel %vm688, %v681, %v685
      %v690 = vand.u32 2147483647, %v623
      %vm691 = vcmp.eq.f32.partialorder %v690, 8.507059e+37
      %v692 = vand.u32 %v623, 2147483648
      %v693 = vor.u32 1.1754944e-38, %v692
      %v694 = vsel %vm691, %v693, %v689
      %v695 = vmul.f32 1.0, %v694
      %v696 = vrcp.pop %v624
      %v697 = vmul.f32 %v624, %v696
      %v698 = vsub.f32 1.0, %v697
      %v699 = vmul.f32 %v696, %v698
      %v700 = vadd.f32 %v696, %v699
      %vm701 = vweird.f32 %v624
      %vm702 = vweird.f32 %v696
      %vm703 = vmor %vm701, %vm702
      %v704 = vsel %vm703, %v696, %v700
      %v705 = vand.u32 2147483647, %v624
      %vm706 = vcmp.eq.f32.partialorder %v705, 8.507059e+37
      %v707 = vand.u32 %v624, 2147483648
      %v708 = vor.u32 1.1754944e-38, %v707
      %v709 = vsel %vm706, %v708, %v704
      %v710 = vmul.f32 1.0, %v709
      %v711 = vrcp.pop %v625
      %v712 = vmul.f32 %v625, %v711
      %v713 = vsub.f32 1.0, %v712
      %v714 = vmul.f32 %v711, %v713
      %v715 = vadd.f32 %v711, %v714
      %vm716 = vweird.f32 %v625
      %vm717 = vweird.f32 %v711
      %vm718 = vmor %vm716, %vm717
      %v719 = vsel %vm718, %v711, %v715
      %v720 = vand.u32 2147483647, %v625
      %vm721 = vcmp.eq.f32.partialorder %v720, 8.507059e+37
      %v722 = vand.u32 %v625, 2147483648
      %v723 = vor.u32 1.1754944e-38, %v722
      %v724 = vsel %vm721, %v723, %v719
      %v725 = vmul.f32 1.0, %v724
      %v726 = vrcp.pop %v626
      %v727 = vmul.f32 %v626, %v726
      %v728 = vsub.f32 1.0, %v727
      %v729 = vmul.f32 %v726, %v728
      %v730 = vadd.f32 %v726, %v729
      %vm731 = vweird.f32 %v626
      %vm732 = vweird.f32 %v726
      %vm733 = vmor %vm731, %vm732
      %v734 = vsel %vm733, %v726, %v730
      %v735 = vand.u32 2147483647, %v626
      %vm736 = vcmp.eq.f32.partialorder %v735, 8.507059e+37
      %v737 = vand.u32 %v626, 2147483648
      %v738 = vor.u32 1.1754944e-38, %v737
      %v739 = vsel %vm736, %v738, %v734
      %v740 = vmul.f32 1.0, %v739
      %v741 = vrcp.pop %v627
      %v742 = vmul.f32 %v627, %v741
      %v743 = vsub.f32 1.0, %v742
      %v744 = vmul.f32 %v741, %v743
      %v745 = vadd.f32 %v741, %v744
      %vm746 = vweird.f32 %v627
      %vm747 = vweird.f32 %v741
      %vm748 = vmor %vm746, %vm747
      %v749 = vsel %vm748, %v741, %v745
      %v750 = vand.u32 2147483647, %v627
      %vm751 = vcmp.eq.f32.partialorder %v750, 8.507059e+37
      %v752 = vand.u32 %v627, 2147483648
      %v753 = vor.u32 1.1754944e-38, %v752
      %v754 = vsel %vm751, %v753, %v749
      %v755 = vmul.f32 1.0, %v754
      %v756 = vrcp.pop %v628
      %v757 = vmul.f32 %v628, %v756
      %v758 = vsub.f32 1.0, %v757
      %v759 = vmul.f32 %v756, %v758
      %v760 = vadd.f32 %v756, %v759
      %vm761 = vweird.f32 %v628
      %vm762 = vweird.f32 %v756
      %vm763 = vmor %vm761, %vm762
      %v764 = vsel %vm763, %v756, %v760
      %v765 = vand.u32 2147483647, %v628
      %vm766 = vcmp.eq.f32.partialorder %v765, 8.507059e+37
      %v767 = vand.u32 %v628, 2147483648
      %v768 = vor.u32 1.1754944e-38, %v767
      %v769 = vsel %vm766, %v768, %v764
      %v770 = vmul.f32 1.0, %v769
      %v771 = vrcp.pop %v629
      %v772 = vmul.f32 %v629, %v771
      %v773 = vsub.f32 1.0, %v772
      %v774 = vmul.f32 %v771, %v773
      %v775 = vadd.f32 %v771, %v774
      %vm776 = vweird.f32 %v629
      %vm777 = vweird.f32 %v771
      %vm778 = vmor %vm776, %vm777
      %v779 = vsel %vm778, %v771, %v775
      %v780 = vand.u32 2147483647, %v629
      %vm781 = vcmp.eq.f32.partialorder %v780, 8.507059e+37
      %v782 = vand.u32 %v629, 2147483648
      %v783 = vor.u32 1.1754944e-38, %v782
      %v784 = vsel %vm781, %v783, %v779
      %v785 = vmul.f32 1.0, %v784
      %v786 = vrcp.pop %v630
      %v787 = vmul.f32 %v630, %v786
      %v788 = vsub.f32 1.0, %v787
      %v789 = vmul.f32 %v786, %v788
      %v790 = vadd.f32 %v786, %v789
      %vm791 = vweird.f32 %v630
      %vm792 = vweird.f32 %v786
      %vm793 = vmor %vm791, %vm792
      %v794 = vsel %vm793, %v786, %v790
      %v795 = vand.u32 2147483647, %v630
      %vm796 = vcmp.eq.f32.partialorder %v795, 8.507059e+37
      %v797 = vand.u32 %v630, 2147483648
      %v798 = vor.u32 1.1754944e-38, %v797
      %v799 = vsel %vm796, %v798, %v794
      %v800 = vmul.f32 1.0, %v799
      %v801 = vrcp.pop %v631
      %v802 = vmul.f32 %v631, %v801
      %v803 = vsub.f32 1.0, %v802
      %v804 = vmul.f32 %v801, %v803
      %v805 = vadd.f32 %v801, %v804
      %vm806 = vweird.f32 %v631
      %vm807 = vweird.f32 %v801
      %vm808 = vmor %vm806, %vm807
      %v809 = vsel %vm808, %v801, %v805
      %v810 = vand.u32 2147483647, %v631
      %vm811 = vcmp.eq.f32.partialorder %v810, 8.507059e+37
      %v812 = vand.u32 %v631, 2147483648
      %v813 = vor.u32 1.1754944e-38, %v812
      %v814 = vsel %vm811, %v813, %v809
      %v815 = vmul.f32 1.0, %v814
      %v816 = vrcp.pop %v632
      %v817 = vmul.f32 %v632, %v816
      %v818 = vsub.f32 1.0, %v817
      %v819 = vmul.f32 %v816, %v818
      %v820 = vadd.f32 %v816, %v819
      %vm821 = vweird.f32 %v632
      %vm822 = vweird.f32 %v816
      %vm823 = vmor %vm821, %vm822
      %v824 = vsel %vm823, %v816, %v820
      %v825 = vand.u32 2147483647, %v632
      %vm826 = vcmp.eq.f32.partialorder %v825, 8.507059e+37
      %v827 = vand.u32 %v632, 2147483648
      %v828 = vor.u32 1.1754944e-38, %v827
      %v829 = vsel %vm826, %v828, %v824
      %v830 = vmul.f32 1.0, %v829
      %v831 = vrcp.pop %v633
      %v832 = vmul.f32 %v633, %v831
      %v833 = vsub.f32 1.0, %v832
      %v834 = vmul.f32 %v831, %v833
      %v835 = vadd.f32 %v831, %v834
      %vm836 = vweird.f32 %v633
      %vm837 = vweird.f32 %v831
      %vm838 = vmor %vm836, %vm837
      %v839 = vsel %vm838, %v831, %v835
      %v840 = vand.u32 2147483647, %v633
      %vm841 = vcmp.eq.f32.partialorder %v840, 8.507059e+37
      %v842 = vand.u32 %v633, 2147483648
      %v843 = vor.u32 1.1754944e-38, %v842
      %v844 = vsel %vm841, %v843, %v839
      %v845 = vmul.f32 1.0, %v844
      %v846 = vrcp.pop %v634
      %v847 = vmul.f32 %v634, %v846
      %v848 = vsub.f32 1.0, %v847
      %v849 = vmul.f32 %v846, %v848
      %v850 = vadd.f32 %v846, %v849
      %vm851 = vweird.f32 %v634
      %vm852 = vweird.f32 %v846
      %vm853 = vmor %vm851, %vm852
      %v854 = vsel %vm853, %v846, %v850
      %v855 = vand.u32 2147483647, %v634
      %vm856 = vcmp.eq.f32.partialorder %v855, 8.507059e+37
      %v857 = vand.u32 %v634, 2147483648
      %v858 = vor.u32 1.1754944e-38, %v857
      %v859 = vsel %vm856, %v858, %v854
      %v860 = vmul.f32 1.0, %v859
      %v861 = vrcp.pop %v635
      %v862 = vmul.f32 %v635, %v861
      %v863 = vsub.f32 1.0, %v862
      %v864 = vmul.f32 %v861, %v863
      %v865 = vadd.f32 %v861, %v864
      %vm866 = vweird.f32 %v635
      %vm867 = vweird.f32 %v861
      %vm868 = vmor %vm866, %vm867
      %v869 = vsel %vm868, %v861, %v865
      %v870 = vand.u32 2147483647, %v635
      %vm871 = vcmp.eq.f32.partialorder %v870, 8.507059e+37
      %v872 = vand.u32 %v635, 2147483648
      %v873 = vor.u32 1.1754944e-38, %v872
      %v874 = vsel %vm871, %v873, %v869
      %v875 = vmul.f32 1.0, %v874
      %v876 = vmul.f32 %v650, 0.998
      %v877 = vmul.f32 %v665, 0.998
      %v878 = vmul.f32 %v680, 0.998
      %v879 = vmul.f32 %v695, 0.998
      %v880 = vmul.f32 %v710, 0.998
      %v881 = vmul.f32 %v725, 0.998
      %v882 = vmul.f32 %v740, 0.998
      %v883 = vmul.f32 %v755, 0.998
      %v884 = vmul.f32 %v770, 0.998
      %v885 = vmul.f32 %v785, 0.998
      %v886 = vmul.f32 %v800, 0.998
      %v887 = vmul.f32 %v815, 0.998
      %v888 = vmul.f32 %v830, 0.998
      %v889 = vmul.f32 %v845, 0.998
      %v890 = vmul.f32 %v860, 0.998
      %v891 = vmul.f32 %v875, 0.998
      %v892 = vadd.f32 %v876, 0.001
      %v893 = vadd.f32 %v877, 0.001
      %v894 = vadd.f32 %v878, 0.001
      %v895 = vadd.f32 %v879, 0.001
      %v896 = vadd.f32 %v880, 0.001
      %v897 = vadd.f32 %v881, 0.001
      %v898 = vadd.f32 %v882, 0.001
      %v899 = vadd.f32 %v883, 0.001
      %v900 = vadd.f32 %v884, 0.001
      %v901 = vadd.f32 %v885, 0.001
      %v902 = vadd.f32 %v886, 0.001
      %v903 = vadd.f32 %v887, 0.001
      %v904 = vadd.f32 %v888, 0.001
      %v905 = vadd.f32 %v889, 0.001
      %v906 = vadd.f32 %v890, 0.001
      %v907 = vadd.f32 %v891, 0.001
      %v908 = vld [vmem:[#allocation6] sm:$0xf]
      %v909 = vlog2.pop %v556
      %v910 = vmul.f32 %v909, 0.6931472
      %v911 = vlog2.pop %v557
      %v912 = vmul.f32 %v911, 0.6931472
      %v913 = vlog2.pop %v558
      %v914 = vmul.f32 %v913, 0.6931472
      %v915 = vlog2.pop %v559
      %v916 = vmul.f32 %v915, 0.6931472
      %v917 = vlog2.pop %v560
      %v918 = vmul.f32 %v917, 0.6931472
      %v919 = vlog2.pop %v561
      %v920 = vmul.f32 %v919, 0.6931472
      %v921 = vlog2.pop %v562
      %v922 = vmul.f32 %v921, 0.6931472
      %v923 = vlog2.pop %v563
      %v924 = vmul.f32 %v923, 0.6931472
      %v925 = vlog2.pop %v564
      %v926 = vmul.f32 %v925, 0.6931472
      %v927 = vlog2.pop %v565
      %v928 = vmul.f32 %v927, 0.6931472
      %v929 = vlog2.pop %v566
      %v930 = vmul.f32 %v929, 0.6931472
      %v931 = vlog2.pop %v567
      %v932 = vmul.f32 %v931, 0.6931472
      %v933 = vlog2.pop %v568
      %v934 = vmul.f32 %v933, 0.6931472
      %v935 = vlog2.pop %v569
      %v936 = vmul.f32 %v935, 0.6931472
      %v937 = vlog2.pop %v570
      %v938 = vmul.f32 %v937, 0.6931472
      %v939 = vlog2.pop %v571
      %v940 = vmul.f32 %v939, 0.6931472
      %v941 = vperm.slane %v908, 0
      %v942 = vmul.f32 %v941, %v910
      %v943 = vmul.f32 %v941, %v912
      %v944 = vmul.f32 %v941, %v914
      %v945 = vmul.f32 %v941, %v916
      %v946 = vmul.f32 %v941, %v918
      %v947 = vmul.f32 %v941, %v920
      %v948 = vmul.f32 %v941, %v922
      %v949 = vmul.f32 %v941, %v924
      %v950 = vmul.f32 %v941, %v926
      %v951 = vmul.f32 %v941, %v928
      %v952 = vmul.f32 %v941, %v930
      %v953 = vmul.f32 %v941, %v932
      %v954 = vmul.f32 %v941, %v934
      %v955 = vmul.f32 %v941, %v936
      %v956 = vmul.f32 %v941, %v938
      %v957 = vmul.f32 %v941, %v940
      %v958 = vsub.f32 1.0, %v556
      %v959 = vsub.f32 1.0, %v557
      %v960 = vsub.f32 1.0, %v558
      %v961 = vsub.f32 1.0, %v559
      %v962 = vsub.f32 1.0, %v560
      %v963 = vsub.f32 1.0, %v561
      %v964 = vsub.f32 1.0, %v562
      %v965 = vsub.f32 1.0, %v563
      %v966 = vsub.f32 1.0, %v564
      %v967 = vsub.f32 1.0, %v565
      %v968 = vsub.f32 1.0, %v566
      %v969 = vsub.f32 1.0, %v567
      %v970 = vsub.f32 1.0, %v568
      %v971 = vsub.f32 1.0, %v569
      %v972 = vsub.f32 1.0, %v570
      %v973 = vsub.f32 1.0, %v571
      %v974 = vlog2.pop %v958
      %v975 = vmul.f32 %v974, 0.6931472
      %v976 = vlog2.pop %v959
      %v977 = vmul.f32 %v976, 0.6931472
      %v978 = vlog2.pop %v960
      %v979 = vmul.f32 %v978, 0.6931472
      %v980 = vlog2.pop %v961
      %v981 = vmul.f32 %v980, 0.6931472
      %v982 = vlog2.pop %v962
      %v983 = vmul.f32 %v982, 0.6931472
      %v984 = vlog2.pop %v963
      %v985 = vmul.f32 %v984, 0.6931472
      %v986 = vlog2.pop %v964
      %v987 = vmul.f32 %v986, 0.6931472
      %v988 = vlog2.pop %v965
      %v989 = vmul.f32 %v988, 0.6931472
      %v990 = vlog2.pop %v966
      %v991 = vmul.f32 %v990, 0.6931472
      %v992 = vlog2.pop %v967
      %v993 = vmul.f32 %v992, 0.6931472
      %v994 = vlog2.pop %v968
      %v995 = vmul.f32 %v994, 0.6931472
      %v996 = vlog2.pop %v969
      %v997 = vmul.f32 %v996, 0.6931472
      %v998 = vlog2.pop %v970
      %v999 = vmul.f32 %v998, 0.6931472
      %v1000 = vlog2.pop %v971
      %v1001 = vmul.f32 %v1000, 0.6931472
      %v1002 = vlog2.pop %v972
      %v1003 = vmul.f32 %v1002, 0.6931472
      %v1004 = vlog2.pop %v973
      %v1005 = vmul.f32 %v1004, 0.6931472
      %v1006 = vperm.slane %v908, 1
      %v1007 = vmul.f32 %v1006, %v975
      %v1008 = vmul.f32 %v1006, %v977
      %v1009 = vmul.f32 %v1006, %v979
      %v1010 = vmul.f32 %v1006, %v981
      %v1011 = vmul.f32 %v1006, %v983
      %v1012 = vmul.f32 %v1006, %v985
      %v1013 = vmul.f32 %v1006, %v987
      %v1014 = vmul.f32 %v1006, %v989
      %v1015 = vmul.f32 %v1006, %v991
      %v1016 = vmul.f32 %v1006, %v993
      %v1017 = vmul.f32 %v1006, %v995
      %v1018 = vmul.f32 %v1006, %v997
      %v1019 = vmul.f32 %v1006, %v999
      %v1020 = vmul.f32 %v1006, %v1001
      %v1021 = vmul.f32 %v1006, %v1003
      %v1022 = vmul.f32 %v1006, %v1005
      %v1023 = vadd.f32 %v942, %v1007
      %v1024 = vadd.f32 %v943, %v1008
      %v1025 = vadd.f32 %v944, %v1009
      %v1026 = vadd.f32 %v945, %v1010
      %v1027 = vadd.f32 %v946, %v1011
      %v1028 = vadd.f32 %v947, %v1012
      %v1029 = vadd.f32 %v948, %v1013
      %v1030 = vadd.f32 %v949, %v1014
      %v1031 = vadd.f32 %v950, %v1015
      %v1032 = vadd.f32 %v951, %v1016
      %v1033 = vadd.f32 %v952, %v1017
      %v1034 = vadd.f32 %v953, %v1018
      %v1035 = vadd.f32 %v954, %v1019
      %v1036 = vadd.f32 %v955, %v1020
      %v1037 = vadd.f32 %v956, %v1021
      %v1038 = vadd.f32 %v957, %v1022
      %v1039 = vlog2.pop %v892
      %v1040 = vmul.f32 %v1039, 0.6931472
      %v1041 = vlog2.pop %v893
      %v1042 = vmul.f32 %v1041, 0.6931472
      %v1043 = vlog2.pop %v894
      %v1044 = vmul.f32 %v1043, 0.6931472
      %v1045 = vlog2.pop %v895
      %v1046 = vmul.f32 %v1045, 0.6931472
      %v1047 = vlog2.pop %v896
      %v1048 = vmul.f32 %v1047, 0.6931472
      %v1049 = vlog2.pop %v897
      %v1050 = vmul.f32 %v1049, 0.6931472
      %v1051 = vlog2.pop %v898
      %v1052 = vmul.f32 %v1051, 0.6931472
      %v1053 = vlog2.pop %v899
      %v1054 = vmul.f32 %v1053, 0.6931472
      %v1055 = vlog2.pop %v900
      %v1056 = vmul.f32 %v1055, 0.6931472
      %v1057 = vlog2.pop %v901
      %v1058 = vmul.f32 %v1057, 0.6931472
      %v1059 = vlog2.pop %v902
      %v1060 = vmul.f32 %v1059, 0.6931472
      %v1061 = vlog2.pop %v903
      %v1062 = vmul.f32 %v1061, 0.6931472
      %v1063 = vlog2.pop %v904
      %v1064 = vmul.f32 %v1063, 0.6931472
      %v1065 = vlog2.pop %v905
      %v1066 = vmul.f32 %v1065, 0.6931472
      %v1067 = vlog2.pop %v906
      %v1068 = vmul.f32 %v1067, 0.6931472
      %v1069 = vlog2.pop %v907
      %v1070 = vmul.f32 %v1069, 0.6931472
      %v1071 = vperm.slane %v908, 2
      %v1072 = vmul.f32 %v1071, %v1040
      %v1073 = vmul.f32 %v1071, %v1042
      %v1074 = vmul.f32 %v1071, %v1044
      %v1075 = vmul.f32 %v1071, %v1046
      %v1076 = vmul.f32 %v1071, %v1048
      %v1077 = vmul.f32 %v1071, %v1050
      %v1078 = vmul.f32 %v1071, %v1052
      %v1079 = vmul.f32 %v1071, %v1054
      %v1080 = vmul.f32 %v1071, %v1056
      %v1081 = vmul.f32 %v1071, %v1058
      %v1082 = vmul.f32 %v1071, %v1060
      %v1083 = vmul.f32 %v1071, %v1062
      %v1084 = vmul.f32 %v1071, %v1064
      %v1085 = vmul.f32 %v1071, %v1066
      %v1086 = vmul.f32 %v1071, %v1068
      %v1087 = vmul.f32 %v1071, %v1070
      %v1088 = vadd.f32 %v1023, %v1072
      %v1089 = vadd.f32 %v1024, %v1073
      %v1090 = vadd.f32 %v1025, %v1074
      %v1091 = vadd.f32 %v1026, %v1075
      %v1092 = vadd.f32 %v1027, %v1076
      %v1093 = vadd.f32 %v1028, %v1077
      %v1094 = vadd.f32 %v1029, %v1078
      %v1095 = vadd.f32 %v1030, %v1079
      %v1096 = vadd.f32 %v1031, %v1080
      %v1097 = vadd.f32 %v1032, %v1081
      %v1098 = vadd.f32 %v1033, %v1082
      %v1099 = vadd.f32 %v1034, %v1083
      %v1100 = vadd.f32 %v1035, %v1084
      %v1101 = vadd.f32 %v1036, %v1085
      %v1102 = vadd.f32 %v1037, %v1086
      %v1103 = vadd.f32 %v1038, %v1087
      %v1104 = vsub.f32 1.0, %v892
      %v1105 = vsub.f32 1.0, %v893
      %v1106 = vsub.f32 1.0, %v894
      %v1107 = vsub.f32 1.0, %v895
      %v1108 = vsub.f32 1.0, %v896
      %v1109 = vsub.f32 1.0, %v897
      %v1110 = vsub.f32 1.0, %v898
      %v1111 = vsub.f32 1.0, %v899
      %v1112 = vsub.f32 1.0, %v900
      %v1113 = vsub.f32 1.0, %v901
      %v1114 = vsub.f32 1.0, %v902
      %v1115 = vsub.f32 1.0, %v903
      %v1116 = vsub.f32 1.0, %v904
      %v1117 = vsub.f32 1.0, %v905
      %v1118 = vsub.f32 1.0, %v906
      %v1119 = vsub.f32 1.0, %v907
      %v1120 = vlog2.pop %v1104
      %v1121 = vmul.f32 %v1120, 0.6931472
      %v1122 = vlog2.pop %v1105
      %v1123 = vmul.f32 %v1122, 0.6931472
      %v1124 = vlog2.pop %v1106
      %v1125 = vmul.f32 %v1124, 0.6931472
      %v1126 = vlog2.pop %v1107
      %v1127 = vmul.f32 %v1126, 0.6931472
      %v1128 = vlog2.pop %v1108
      %v1129 = vmul.f32 %v1128, 0.6931472
      %v1130 = vlog2.pop %v1109
      %v1131 = vmul.f32 %v1130, 0.6931472
      %v1132 = vlog2.pop %v1110
      %v1133 = vmul.f32 %v1132, 0.6931472
      %v1134 = vlog2.pop %v1111
      %v1135 = vmul.f32 %v1134, 0.6931472
      %v1136 = vlog2.pop %v1112
      %v1137 = vmul.f32 %v1136, 0.6931472
      %v1138 = vlog2.pop %v1113
      %v1139 = vmul.f32 %v1138, 0.6931472
      %v1140 = vlog2.pop %v1114
      %v1141 = vmul.f32 %v1140, 0.6931472
      %v1142 = vlog2.pop %v1115
      %v1143 = vmul.f32 %v1142, 0.6931472
      %v1144 = vlog2.pop %v1116
      %v1145 = vmul.f32 %v1144, 0.6931472
      %v1146 = vlog2.pop %v1117
      %v1147 = vmul.f32 %v1146, 0.6931472
      %v1148 = vlog2.pop %v1118
      %v1149 = vmul.f32 %v1148, 0.6931472
      %v1150 = vlog2.pop %v1119
      %v1151 = vmul.f32 %v1150, 0.6931472
      %v1152 = vperm.slane %v908, 3
      %v1153 = vmul.f32 %v1152, %v1121
      %v1154 = vmul.f32 %v1152, %v1123
      %v1155 = vmul.f32 %v1152, %v1125
      %v1156 = vmul.f32 %v1152, %v1127
      %v1157 = vmul.f32 %v1152, %v1129
      %v1158 = vmul.f32 %v1152, %v1131
      %v1159 = vmul.f32 %v1152, %v1133
      %v1160 = vmul.f32 %v1152, %v1135
      %v1161 = vmul.f32 %v1152, %v1137
      %v1162 = vmul.f32 %v1152, %v1139
      %v1163 = vmul.f32 %v1152, %v1141
      %v1164 = vmul.f32 %v1152, %v1143
      %v1165 = vmul.f32 %v1152, %v1145
      %v1166 = vmul.f32 %v1152, %v1147
      %v1167 = vmul.f32 %v1152, %v1149
      %v1168 = vmul.f32 %v1152, %v1151
      %v1169 = vadd.f32 %v1088, %v1153
      %v1170 = vadd.f32 %v1089, %v1154
      %v1171 = vadd.f32 %v1090, %v1155
      %v1172 = vadd.f32 %v1091, %v1156
      %v1173 = vadd.f32 %v1092, %v1157
      %v1174 = vadd.f32 %v1093, %v1158
      %v1175 = vadd.f32 %v1094, %v1159
      %v1176 = vadd.f32 %v1095, %v1160
      %v1177 = vadd.f32 %v1096, %v1161
      %v1178 = vadd.f32 %v1097, %v1162
      %v1179 = vadd.f32 %v1098, %v1163
      %v1180 = vadd.f32 %v1099, %v1164
      %v1181 = vadd.f32 %v1100, %v1165
      %v1182 = vadd.f32 %v1101, %v1166
      %v1183 = vadd.f32 %v1102, %v1167
      %v1184 = vadd.f32 %v1103, %v1168
      %v1185 = vmax.f32 %v1169, %v1173
      %v1186 = vmax.f32 %v1170, %v1174
      %v1187 = vmax.f32 %v1171, %v1175
      %v1188 = vmax.f32 %v1172, %v1176
      %v1189 = vmax.f32 %v1185, %v1177
      %v1190 = vmax.f32 %v1186, %v1178
      %v1191 = vmax.f32 %v1187, %v1179
      %v1192 = vmax.f32 %v1188, %v1180
      %v1193 = vmax.f32 %v1189, %v1181
      %v1194 = vmax.f32 %v1190, %v1182
      %v1195 = vmax.f32 %v1191, %v1183
      %v1196 = vmax.f32 %v1192, %v1184
      %v1197 = vmax.f32 %v1193, %v1194
      %v1198 = vmax.f32 %v1195, %v1196
      %v1199 = vmax.f32 %v1197, %v1198
      %v1200 = vrot.slane %v1199, 4
      %v1201 = vmax.f32 %v1199, %v1200
      %v1202 = vrot.slane %v1201, 2
      %v1203 = vmax.f32 %v1201, %v1202
      %v1204 = vrot.slane %v1203, 1
      %v1205 = vmax.f32 %v1203, %v1204
      %v1206 = vsub.f32 %v1169, %v1205
      %v1207 = vsub.f32 %v1170, %v1205
      %v1208 = vsub.f32 %v1171, %v1205
      %v1209 = vsub.f32 %v1172, %v1205
      %v1210 = vsub.f32 %v1173, %v1205
      %v1211 = vsub.f32 %v1174, %v1205
      %v1212 = vsub.f32 %v1175, %v1205
      %v1213 = vsub.f32 %v1176, %v1205
      %v1214 = vsub.f32 %v1177, %v1205
      %v1215 = vsub.f32 %v1178, %v1205
      %v1216 = vsub.f32 %v1179, %v1205
      %v1217 = vsub.f32 %v1180, %v1205
      %v1218 = vsub.f32 %v1181, %v1205
      %v1219 = vsub.f32 %v1182, %v1205
      %v1220 = vsub.f32 %v1183, %v1205
      %v1221 = vsub.f32 %v1184, %v1205
      %v1222 = vmul.f32 %v1206, 1.442695
      %v1223 = vpow.pop %v1222
      %v1224 = vmul.f32 %v1207, 1.442695
      %v1225 = vpow.pop %v1224
      %v1226 = vmul.f32 %v1208, 1.442695
      %v1227 = vpow.pop %v1226
      %v1228 = vmul.f32 %v1209, 1.442695
      %v1229 = vpow.pop %v1228
      %v1230 = vmul.f32 %v1210, 1.442695
      %v1231 = vpow.pop %v1230
      %v1232 = vmul.f32 %v1211, 1.442695
      %v1233 = vpow.pop %v1232
      %v1234 = vmul.f32 %v1212, 1.442695
      %v1235 = vpow.pop %v1234
      %v1236 = vmul.f32 %v1213, 1.442695
      %v1237 = vpow.pop %v1236
      %v1238 = vmul.f32 %v1214, 1.442695
      %v1239 = vpow.pop %v1238
      %v1240 = vmul.f32 %v1215, 1.442695
      %v1241 = vpow.pop %v1240
      %v1242 = vmul.f32 %v1216, 1.442695
      %v1243 = vpow.pop %v1242
      %v1244 = vmul.f32 %v1217, 1.442695
      %v1245 = vpow.pop %v1244
      %v1246 = vmul.f32 %v1218, 1.442695
      %v1247 = vpow.pop %v1246
      %v1248 = vmul.f32 %v1219, 1.442695
      %v1249 = vpow.pop %v1248
      %v1250 = vmul.f32 %v1220, 1.442695
      %v1251 = vpow.pop %v1250
      %v1252 = vmul.f32 %v1221, 1.442695
      %v1253 = vpow.pop %v1252
      %v1254 = vadd.f32 %v1223, %v1225
      %v1255 = vadd.f32 %v1254, %v1227
      %v1256 = vadd.f32 %v1255, %v1229
      %v1257 = vadd.f32 %v1256, %v1231
      %v1258 = vadd.f32 %v1257, %v1233
      %v1259 = vadd.f32 %v1258, %v1235
      %v1260 = vadd.f32 %v1259, %v1237
      %v1261 = vadd.f32 %v1260, %v1239
      %v1262 = vadd.f32 %v1261, %v1241
      %v1263 = vadd.f32 %v1262, %v1243
      %v1264 = vadd.f32 %v1263, %v1245
      %v1265 = vadd.f32 %v1264, %v1247
      %v1266 = vadd.f32 %v1265, %v1249
      %v1267 = vadd.f32 %v1266, %v1251
      %v1268 = vadd.f32 %v1267, %v1253
      %v1269 = vrot.slane %v1268, 4
      %v1270 = vadd.f32 %v1268, %v1269
      %v1271 = vrot.slane %v1270, 2
      %v1272 = vadd.f32 %v1270, %v1271
      %v1273 = vrot.slane %v1272, 1
      %v1274 = vadd.f32 %v1272, %v1273
      %v1275 = vlog2.pop %v1274
      %v1276 = vmul.f32 %v1275, 0.6931472
      %v1277 = vadd.f32 %v1205, %v1276
      %v1278 = vsub.f32 %v1277, 4.8520303
      %vm1279 = vcmp.lt.f32.partialorder %v908, 1.0
      %v1280 = vsel %vm1279, -9999.0, %v1278
      %1281 = vst [vmem:[#allocation9 - $0x2] sm:$0x4] %v1280
    $region29: #{tpu_custom_call.1} parent=1 // pred_fallthru
      _
    %p1282 = pneg %p59
    // Predicated region
    $region30: #{tpu_custom_call.1} parent=1 // pred_check
      _
    $region31: #{tpu_custom_call.1} parent=1 // pred_check_branch
      %1284 = sbr.rel (%p59) target = $region33
    $region32: #{tpu_custom_call.1} parent=1 // pred_region
      %1285 = vst [vmem:[#allocation9] sm:$0x1] -9999.0
    $region33: #{tpu_custom_call.1} parent=1 // pred_fallthru
      _
    // Predicated region
    $region34: #{tpu_custom_call.1} parent=1 // pred_check
      _
    $region35: #{tpu_custom_call.1} parent=1 // pred_check_branch
      %1287 = sbr.rel (0) target = $region37
    $region36: #{tpu_custom_call.1} parent=1 // pred_region
      %1289 = vsyncadd [#allocation4], 0
      %s1291 = sshll.u32 [#allocation9], 4
      %s1292 = int_to_ptr.vmem [resolvable:$true] %s1291
      %s1293 = sshll.u32 %s3, 4
      %s1294 = int_to_ptr.hbm [resolvable:$true] %s1293
      %1296 = dma.vmem_to_hbm [thread:$0]  %s1292, 16, %s1294, [#allocation4]
    $region37: #{tpu_custom_call.1} parent=1 // pred_fallthru
      _
    // Predicated region
    $region38: #{tpu_custom_call.1} parent=1 // pred_check
      _
    $region39: #{tpu_custom_call.1} parent=1 // pred_check_branch
      %1298 = sbr.rel (0) target = $region41
    $region40: #{tpu_custom_call.1} parent=1 // pred_region
      %1300 = dma.done [#allocation4], 16
    $region41: #{tpu_custom_call.1} parent=1 // pred_fallthru
      _
    %1301 = vsyncpa [#allocation3], 1
    %1302 = vsyncpa [#allocation8], 1
    %1303 = vsyncpa [#allocation4], 1
    %1304 = vsyncpa [#allocation5], 1

</llo_original>
